<compile_context>
chip_gen: v7x
topology: tpu7x:2x2x1
jax: 0.10.0
libtpu: 0.0.40
codegen_flags: <defaults>
</compile_context>

<pallas_src>
import math
import functools

import jax
import jax.numpy as jnp
from jax.experimental import pallas as pl
from jax.experimental.pallas import tpu as pltpu


def _round_up(x, m):
    return ((x + m - 1) // m) * m


def _batch_tiling(B):
    """Pick the batch tile TB (and padded batch) so the output block (TB, E) is legal:
    TB divisible by 8, or TB == padded batch.  Prefers big tiles to amortize the
    per-grid-step overhead; never pads the big tensors for small batches."""
    for t in (16, 8):
        if B % t == 0:
            return B, t
    if B <= 32:
        return B, B            # single tile; block dim == full dim is always legal
    return _round_up(B, 8), 8  # large awkward batch: pad a few rows


# ----------------------------------------------------------------------------
# Fused Pallas kernel:
#   cap = x @ W + b  (MXU, bf16 in / f32 acc)
#   cap = masked_fill(cap, ~mask, -10000)
#   cap = descending bitonic sort over tokens (per sample, per channel)
#   pooled = sum(cap * gpo_weights)            (weights are 0 at padded ranks)
#   out = l2norm(pooled)                       (optional)
# ----------------------------------------------------------------------------
def _fused_kernel(x_ref, w_ref, b_ref, pw_ref, mask_ref, o_ref, *,
                  n_tok, n_sort, apply_l2norm):
    TB = x_ref.shape[0]
    D = x_ref.shape[2]
    E = w_ref.shape[1]
    R = TB * n_tok                      # valid token rows in this batch tile
    RS = TB * n_sort                    # rows after padding the sort axis to a pow2

    # ---- 1) cap_emb = x @ W + b : one (TB*N, 768) x (768, E) MXU matmul.
    #         Cast to bf16 in-kernel (no extra XLA pass over HBM), f32 accumulation.
    x = x_ref[...].reshape(R, D).astype(jnp.bfloat16)
    cap = jnp.dot(x, w_ref[...], preferred_element_type=jnp.float32) + b_ref[...]

    # ---- 2) GPO masked_fill: tokens past each caption length -> -10000
    #         (sentinels sort to the bottom, exactly as in the reference).
    cap = jnp.where(mask_ref[...] > 0.0, cap, -10000.0)

    # ---- 3) pad each sample's token axis to the power-of-two sort length (in VMEM).
    if n_sort > n_tok:
        cap = cap.reshape(TB, n_tok, E)
        pad = jnp.full((TB, n_sort - n_tok, E), -10000.0, dtype=cap.dtype)
        cap = jnp.concatenate([cap, pad], axis=1).reshape(RS, E)

    # ---- 4) per-sample DESCENDING bitonic sort along the token axis, on the flat
    #         (TB*n_sort, E) layout.  n_sort is a power of two, so the bitonic partner
    #         index g ^ j stays inside each sample's contiguous block of n_sort rows and
    #         one whole-tile sublane roll per direction serves all TB samples at once.
    #         pltpu.roll runs on the XLU, overlapping the VPU min/max/select work.
    n_loc = jax.lax.broadcasted_iota(jnp.int32, (RS, 1), 0) & (n_sort - 1)

    # Roll-direction probe: under jnp.roll semantics, rolling +1 along sublanes brings
    # old row 7 to row 0.  Makes the network correct under either rotate convention.
    probe = jax.lax.broadcasted_iota(jnp.int32, (8, 128), 0)
    flipped = pltpu.roll(probe, 1, axis=0)[0:1, 0:1] != 7          # (1, 1) bool

    k = 2
    while k <= n_sort:
        j = k // 2
        while j >= 1:
            use_fwd = (n_loc & j) == 0          # partner sits at +j (else at -j)
            asc_blk = (n_loc & k) != 0          # sub-block direction for a DESCENDING sort
            take_min = use_fwd == asc_blk
            plus_j = pltpu.roll(cap, RS - j, axis=0)   # cap[g + j]  (jnp.roll convention)
            minus_j = pltpu.roll(cap, j, axis=0)       # cap[g - j]
            partner = jnp.where(use_fwd != flipped, plus_j, minus_j)   # == cap[g ^ j]
            cap = jnp.where(take_min,
                            jnp.minimum(cap, partner),
                            jnp.maximum(cap, partner))
            j //= 2
        k *= 2

    # ---- 5) GPO weighted pooling.  Pool weights are exactly 0 at padded ranks, which
    #         absorbs the reference's post-sort masked_fill(0).
    cap = cap.reshape(TB, n_sort, E)[:, :n_tok, :]
    pooled = jnp.sum(cap * pw_ref[...], axis=1)                     # (TB, E) f32

    # ---- 6) l2norm, matching the reference: x / (||x|| + 1e-8).
    if apply_l2norm:
        nrm = jnp.sqrt(jnp.sum(pooled * pooled, axis=-1, keepdims=True)) + 1e-8
        pooled = pooled / nrm
    o_ref[...] = pooled


def _encoder_pool_fused(bert_emb, w_bf, bias, pool_w, mask_flat, *,
                        TB, n_sort, apply_l2norm):
    B, N8, D = bert_emb.shape
    E = w_bf.shape[1]
    kernel = functools.partial(_fused_kernel, n_tok=N8, n_sort=n_sort,
                               apply_l2norm=apply_l2norm)
    return pl.pallas_call(
        kernel,
        out_shape=jax.ShapeDtypeStruct((B, E), jnp.float32),
        grid=(B // TB,),
        in_specs=[
            pl.BlockSpec((TB, N8, D), lambda b: (b, 0, 0)),   # BERT feature tile (f32)
            pl.BlockSpec((D, E), lambda b: (0, 0)),           # resident weight (bf16)
            pl.BlockSpec((1, E), lambda b: (0, 0)),           # bias
            pl.BlockSpec((TB, N8, 1), lambda b: (b, 0, 0)),   # GPO pool weights
            pl.BlockSpec((TB * N8, 1), lambda b: (b, 0)),     # validity mask (flat rows)
        ],
        out_specs=pl.BlockSpec((TB, E), lambda b: (b, 0)),    # lane-dense pooled tile
        compiler_params=pltpu.CompilerParams(
            dimension_semantics=("parallel",),
            vmem_limit_bytes=40 * 1024 * 1024,
        ),
    )(bert_emb, w_bf, bias, pool_w, mask_flat)


# ----------------------------------------------------------------------------
# Plain-JAX glue: positional encoding + packed bidirectional GRU (GPO scores)
# (tiny serial recurrence over a 32-dim state; not worth a Pallas kernel)
# ----------------------------------------------------------------------------
def positional_encoding_1d(d_model, length):
    position = jnp.arange(length, dtype=jnp.float32)[:, None]
    div_term = jnp.exp(jnp.arange(0, d_model, 2, dtype=jnp.float32)
                       * -(math.log(10000.0) / d_model))
    pe = jnp.zeros((length, d_model), jnp.float32)
    pe = pe.at[:, 0::2].set(jnp.sin(position * div_term))
    pe = pe.at[:, 1::2].set(jnp.cos(position * div_term))
    return pe


def _gpo_scores(pe, lengths, p):
    # Emulates pack_padded_sequence + biGRU + pad_packed_sequence: the hidden state is
    # forced to 0 outside each sample's length, which for the backward direction means
    # the recurrence (re)starts exactly at position length-1.
    N = pe.shape[0]
    B = lengths.shape[0]
    H = p["gru_w_hh_f"].shape[1]
    valid = (jnp.arange(N)[:, None] < lengths[None, :]).astype(jnp.float32)   # (N, B)

    def run(pe_seq, valid_seq, w_ih, w_hh, b_ih, b_hh):
        def step(h, inp):
            x_t, v_t = inp                                 # (d_pe,), (B,)
            gi = x_t @ w_ih.T + b_ih                       # (3H,)
            gh = h @ w_hh.T + b_hh                         # (B, 3H)
            i_r, i_z, i_n = jnp.split(gi, 3)
            h_r, h_z, h_n = jnp.split(gh, 3, axis=-1)
            r = jax.nn.sigmoid(i_r + h_r)
            z = jax.nn.sigmoid(i_z + h_z)
            n = jnp.tanh(i_n + r * h_n)
            h_new = (1.0 - z) * n + z * h
            h_new = h_new * v_t[:, None]                   # packed-sequence semantics
            return h_new, h_new
        h0 = jnp.zeros((B, H), jnp.float32)
        _, outs = jax.lax.scan(step, h0, (pe_seq, valid_seq))
        return outs                                        # (N, B, H)

    out_f = run(pe, valid,
                p["gru_w_ih_f"], p["gru_w_hh_f"], p["gru_b_ih_f"], p["gru_b_hh_f"])
    out_b = run(pe[::-1], valid[::-1],
                p["gru_w_ih_b"], p["gru_w_hh_b"], p["gru_b_ih_b"], p["gru_b_hh_b"])[::-1]
    out = 0.5 * (out_f + out_b)                            # (N, B, H)
    scores = jnp.einsum("nbh,h->bn", out, p["gpo_lin"][:, 0])   # (B, N)
    return scores


def _pool_weights_and_mask(lengths, scores, N):
    mask = (jnp.arange(N)[None, :] < lengths[:, None]).astype(jnp.float32)    # (B, N)
    scores = jnp.where(mask > 0, scores, -10000.0)
    weights = jax.nn.softmax(scores / 0.1, axis=1)
    return weights * mask, mask


# ----------------------------------------------------------------------------
# Parameter init (deterministic, shapes from module __init__)
# ----------------------------------------------------------------------------
def init_params(key, embed_size, d_pe=32, d_hidden=32, bert_dim=768):
    ks = jax.random.split(key, 12)
    p = {}
    # nn.Linear(768, embed_size), torch default init bounds; weight stored transposed.
    k = 1.0 / math.sqrt(bert_dim)
    p["w_lin"] = jax.random.uniform(ks[0], (bert_dim, embed_size), jnp.float32, -k, k)
    p["b_lin"] = jax.random.uniform(ks[1], (1, embed_size), jnp.float32, -k, k)
    # GPO(32, 32): bidirectional GRU + Linear(32 -> 1, no bias)
    kg = 1.0 / math.sqrt(d_hidden)
    for i, d in enumerate(("f", "b")):
        base = 2 + 4 * i
        p[f"gru_w_ih_{d}"] = jax.random.uniform(ks[base + 0], (3 * d_hidden, d_pe), jnp.float32, -kg, kg)
        p[f"gru_w_hh_{d}"] = jax.random.uniform(ks[base + 1], (3 * d_hidden, d_hidden), jnp.float32, -kg, kg)
        p[f"gru_b_ih_{d}"] = jax.random.uniform(ks[base + 2], (3 * d_hidden,), jnp.float32, -kg, kg)
        p[f"gru_b_hh_{d}"] = jax.random.uniform(ks[base + 3], (3 * d_hidden,), jnp.float32, -kg, kg)
    p["gpo_lin"] = jax.random.uniform(ks[10], (d_hidden, 1), jnp.float32, -kg, kg)
    return p


# ----------------------------------------------------------------------------
# Forward (EncoderText, default non-adapter branch)
# ----------------------------------------------------------------------------
def encoder_text_forward(bert_emb, lengths, params, no_txtnorm=False):
    B, N, D = bert_emb.shape

    # GPO attention weights over ranks (tiny: PE -> packed biGRU -> linear -> softmax).
    pe = positional_encoding_1d(params["gru_w_ih_f"].shape[1], N)
    scores = _gpo_scores(pe, lengths, params)
    weights, mask = _pool_weights_and_mask(lengths, scores, N)      # (B, N) each

    # Token axis padded to a multiple of 8 (sublane tile).  No-op when captions are
    # already padded to a multiple of 8 upstream (recommended).
    N8 = _round_up(max(N, 8), 8)
    if N8 != N:
        bert_emb = jnp.pad(bert_emb, ((0, 0), (0, N8 - N), (0, 0)))
        weights = jnp.pad(weights, ((0, 0), (0, N8 - N)))
        mask = jnp.pad(mask, ((0, 0), (0, N8 - N)))

    # Batch tiling: biggest tile that divides B; only pads for large awkward batches.
    B_pad, TB = _batch_tiling(B)
    if B_pad != B:
        bert_emb = jnp.pad(bert_emb, ((0, B_pad - B), (0, 0), (0, 0)))
        weights = jnp.pad(weights, ((0, B_pad - B), (0, 0)))
        mask = jnp.pad(mask, ((0, B_pad - B), (0, 0)))

    n_sort = max(8, 1 << (N8 - 1).bit_length())     # power-of-two sort length
    w_bf = params["w_lin"].astype(jnp.bfloat16)     # tiny one-time weight cast

    pooled = _encoder_pool_fused(
        bert_emb, w_bf, params["b_lin"],
        weights[..., None],                          # (B_pad, N8, 1) pool weights
        mask.reshape(B_pad * N8, 1),                 # (B_pad*N8, 1) validity mask
        TB=TB, n_sort=n_sort, apply_l2norm=not no_txtnorm)
    return pooled if B_pad == B else pooled[:B]      # (B, E)


# ----------------------------------------------------------------------------
# Pure-JAX reference (same bf16-matmul numerics) for self-check
# ----------------------------------------------------------------------------
def _reference_forward(bert_emb, lengths, params, no_txtnorm=False):
    B, N, D = bert_emb.shape
    cap = (jnp.dot(bert_emb.reshape(B * N, D).astype(jnp.bfloat16),
                   params["w_lin"].astype(jnp.bfloat16),
                   preferred_element_type=jnp.float32)
           + params["b_lin"]).reshape(B, N, -1)
    pe = positional_encoding_1d(params["gru_w_ih_f"].shape[1], N)
    scores = _gpo_scores(pe, lengths, params)
    mask = (jnp.arange(N)[None, :] < lengths[:, None]).astype(jnp.float32)
    scores = jnp.where(mask > 0, scores, -10000.0)
    weights = jax.nn.softmax(scores / 0.1, axis=1)
    m3 = mask[:, :, None]
    x = jnp.where(m3 > 0, cap, -10000.0)
    x = -jnp.sort(-x, axis=1)                              # descending per channel
    x = x * m3
    pooled = jnp.sum(x * weights[:, :, None], axis=1)
    if not no_txtnorm:
        pooled = pooled / (jnp.sqrt(jnp.sum(pooled * pooled, -1, keepdims=True)) + 1e-8)
    return pooled


# ----------------------------------------------------------------------------
if __name__ == "__main__":
    key = jax.random.PRNGKey(0)
    B, L, BERT_DIM, EMBED = 2, 8, 768, 128
    k_emb, k_param = jax.random.split(key)

    # TODO(synk): stand-in for BertModel('bert-base-uncased')(x, attention_mask)[0]
    bert_emb = jax.random.normal(k_emb, (B, L, BERT_DIM), jnp.float32)
    lengths = jnp.array([L, 5], dtype=jnp.int32)           # variable caption lengths
    params = init_params(k_param, EMBED)

    fwd = jax.jit(encoder_text_forward)
    out = fwd(bert_emb, lengths, params)
    ref = _reference_forward(bert_emb, lengths, params)
    jax.block_until_ready((out, ref))

    assert out.shape == (B, EMBED)
    assert bool(jnp.all(jnp.isfinite(out)))
    assert bool(jnp.allclose(jnp.linalg.norm(out, axis=-1), 1.0, atol=1e-3))
    assert bool(jnp.allclose(out, ref, atol=1e-3, rtol=1e-3))
    print("KERNEL_OK")
</pallas_src>

<mosaic_0001>
module attributes {stable_mosaic.version = 11 : i64} {
  func.func @_fused_kernel(%arg0: i32, %arg1: memref<2x8x768xf32, #tpu.memory_space<vmem>>, %arg2: memref<768x128xbf16, #tpu.memory_space<vmem>>, %arg3: memref<1x128xf32, #tpu.memory_space<vmem>>, %arg4: memref<2x8x1xf32, #tpu.memory_space<vmem>>, %arg5: memref<16x1xf32, #tpu.memory_space<vmem>>, %arg6: memref<2x128xf32, #tpu.memory_space<vmem>>) attributes {dimension_semantics = [#tpu.dimension_semantics<parallel>], iteration_bounds = array<i64: 1>, scalar_prefetch = 0 : i64, scratch_operands = 0 : i64, tpu.core_type = #tpu.core_type<tc>, window_params = [{transform_indices = @transform_0, window_bounds = array<i64: 2, 8, 768>}, {pipeline_mode = #tpu.pipeline_mode<synchronous>, transform_indices = @transform_1, window_bounds = array<i64: 768, 128>}, {pipeline_mode = #tpu.pipeline_mode<synchronous>, transform_indices = @transform_2, window_bounds = array<i64: 1, 128>}, {transform_indices = @transform_3, window_bounds = array<i64: 2, 8, 1>}, {transform_indices = @transform_4, window_bounds = array<i64: 16, 1>}, {transform_indices = @transform_5, window_bounds = array<i64: 2, 128>}]} {
    %c0 = arith.constant 0 : index
    %c0_0 = arith.constant 0 : index
    %c0_1 = arith.constant 0 : index
    %0 = vector.load %arg1[%c0, %c0_0, %c0_1] : memref<2x8x768xf32, #tpu.memory_space<vmem>>, vector<2x8x768xf32>
    %1 = vector.shape_cast %0 : vector<2x8x768xf32> to vector<16x768xf32>
    %2 = arith.truncf %1 : vector<16x768xf32> to vector<16x768xbf16>
    %c0_2 = arith.constant 0 : index
    %c0_3 = arith.constant 0 : index
    %3 = vector.load %arg2[%c0_2, %c0_3] : memref<768x128xbf16, #tpu.memory_space<vmem>>, vector<768x128xbf16>
    %cst = arith.constant dense<0.000000e+00> : vector<16x128xf32>
    %4 = tpu.matmul %2, %3, %cst {dimension_numbers = #tpu.dot_dimension_numbers<[1], [0], [0], [1], [0, 0, 1, 1], [], []>} : vector<16x768xbf16>, vector<768x128xbf16>, vector<16x128xf32> -> vector<16x128xf32>
    %c0_4 = arith.constant 0 : index
    %c0_5 = arith.constant 0 : index
    %5 = vector.load %arg3[%c0_4, %c0_5] : memref<1x128xf32, #tpu.memory_space<vmem>>, vector<1x128xf32>
    %6 = vector.broadcast %5 : vector<1x128xf32> to vector<16x128xf32>
    %7 = arith.addf %4, %6 : vector<16x128xf32>
    %c0_6 = arith.constant 0 : index
    %c0_7 = arith.constant 0 : index
    %8 = vector.load %arg5[%c0_6, %c0_7] : memref<16x1xf32, #tpu.memory_space<vmem>>, vector<16x1xf32>
    %cst_8 = arith.constant 0.000000e+00 : f32
    %9 = vector.broadcast %cst_8 : f32 to vector<16x1xf32>
    %10 = arith.cmpf ogt, %8, %9 : vector<16x1xf32>
    %cst_9 = arith.constant -1.000000e+04 : f32
    %11 = vector.shape_cast %10 : vector<16x1xi1> to vector<16x1xi1>
    %12 = vector.broadcast %11 : vector<16x1xi1> to vector<16x128xi1>
    %13 = vector.broadcast %cst_9 : f32 to vector<16x128xf32>
    %14 = arith.select %12, %7, %13 : vector<16x128xi1>, vector<16x128xf32>
    %15 = tpu.iota {dimensions = array<i32: 0>} : vector<16x1xi32>
    %c7_i32 = arith.constant 7 : i32
    %16 = vector.broadcast %c7_i32 : i32 to vector<16x1xi32>
    %17 = arith.andi %15, %16 : vector<16x1xi32>
    %18 = tpu.iota {dimensions = array<i32: 0>} : vector<8x128xi32>
    %c1_i32 = arith.constant 1 : i32
    %19 = tpu.dynamic_rotate %18 by %c1_i32 dim 0 : vector<8x128xi32>, i32 -> vector<8x128xi32>
    %20 = vector.extract_strided_slice %19 {offsets = [0, 0], sizes = [1, 1], strides = [1, 1]} : vector<8x128xi32> to vector<1x1xi32>
    %c7_i32_10 = arith.constant 7 : i32
    %21 = vector.broadcast %c7_i32_10 : i32 to vector<1x1xi32>
    %22 = arith.cmpi ne, %20, %21 : vector<1x1xi32>
    %c1_i32_11 = arith.constant 1 : i32
    %23 = vector.broadcast %c1_i32_11 : i32 to vector<16x1xi32>
    %24 = arith.andi %17, %23 : vector<16x1xi32>
    %c0_i32 = arith.constant 0 : i32
    %25 = vector.broadcast %c0_i32 : i32 to vector<16x1xi32>
    %26 = arith.cmpi eq, %24, %25 : vector<16x1xi32>
    %c2_i32 = arith.constant 2 : i32
    %27 = vector.broadcast %c2_i32 : i32 to vector<16x1xi32>
    %28 = arith.andi %17, %27 : vector<16x1xi32>
    %c0_i32_12 = arith.constant 0 : i32
    %29 = vector.broadcast %c0_i32_12 : i32 to vector<16x1xi32>
    %30 = arith.cmpi ne, %28, %29 : vector<16x1xi32>
    %31 = arith.xori %26, %30 : vector<16x1xi1>
    %cst_13 = arith.constant dense<true> : vector<16x1xi1>
    %32 = arith.xori %31, %cst_13 : vector<16x1xi1>
    %c15_i32 = arith.constant 15 : i32
    %33 = tpu.dynamic_rotate %14 by %c15_i32 dim 0 : vector<16x128xf32>, i32 -> vector<16x128xf32>
    %c1_i32_14 = arith.constant 1 : i32
    %34 = tpu.dynamic_rotate %14 by %c1_i32_14 dim 0 : vector<16x128xf32>, i32 -> vector<16x128xf32>
    %35 = vector.broadcast %22 : vector<1x1xi1> to vector<16x1xi1>
    %36 = vector.broadcast %35 : vector<16x1xi1> to vector<16x1xi1>
    %37 = arith.xori %26, %36 : vector<16x1xi1>
    %38 = vector.shape_cast %37 : vector<16x1xi1> to vector<16x1xi1>
    %39 = vector.broadcast %38 : vector<16x1xi1> to vector<16x128xi1>
    %40 = arith.select %39, %33, %34 : vector<16x128xi1>, vector<16x128xf32>
    %41 = arith.minimumf %14, %40 : vector<16x128xf32>
    %42 = arith.maximumf %14, %40 : vector<16x128xf32>
    %43 = vector.shape_cast %32 : vector<16x1xi1> to vector<16x1xi1>
    %44 = vector.broadcast %43 : vector<16x1xi1> to vector<16x128xi1>
    %45 = arith.select %44, %41, %42 : vector<16x128xi1>, vector<16x128xf32>
    %c2_i32_15 = arith.constant 2 : i32
    %46 = vector.broadcast %c2_i32_15 : i32 to vector<16x1xi32>
    %47 = arith.andi %17, %46 : vector<16x1xi32>
    %c0_i32_16 = arith.constant 0 : i32
    %48 = vector.broadcast %c0_i32_16 : i32 to vector<16x1xi32>
    %49 = arith.cmpi eq, %47, %48 : vector<16x1xi32>
    %c4_i32 = arith.constant 4 : i32
    %50 = vector.broadcast %c4_i32 : i32 to vector<16x1xi32>
    %51 = arith.andi %17, %50 : vector<16x1xi32>
    %c0_i32_17 = arith.constant 0 : i32
    %52 = vector.broadcast %c0_i32_17 : i32 to vector<16x1xi32>
    %53 = arith.cmpi ne, %51, %52 : vector<16x1xi32>
    %54 = arith.xori %49, %53 : vector<16x1xi1>
    %cst_18 = arith.constant dense<true> : vector<16x1xi1>
    %55 = arith.xori %54, %cst_18 : vector<16x1xi1>
    %c14_i32 = arith.constant 14 : i32
    %56 = tpu.dynamic_rotate %45 by %c14_i32 dim 0 : vector<16x128xf32>, i32 -> vector<16x128xf32>
    %c2_i32_19 = arith.constant 2 : i32
    %57 = tpu.dynamic_rotate %45 by %c2_i32_19 dim 0 : vector<16x128xf32>, i32 -> vector<16x128xf32>
    %58 = vector.broadcast %22 : vector<1x1xi1> to vector<16x1xi1>
    %59 = vector.broadcast %58 : vector<16x1xi1> to vector<16x1xi1>
    %60 = arith.xori %49, %59 : vector<16x1xi1>
    %61 = vector.shape_cast %60 : vector<16x1xi1> to vector<16x1xi1>
    %62 = vector.broadcast %61 : vector<16x1xi1> to vector<16x128xi1>
    %63 = arith.select %62, %56, %57 : vector<16x128xi1>, vector<16x128xf32>
    %64 = arith.minimumf %45, %63 : vector<16x128xf32>
    %65 = arith.maximumf %45, %63 : vector<16x128xf32>
    %66 = vector.shape_cast %55 : vector<16x1xi1> to vector<16x1xi1>
    %67 = vector.broadcast %66 : vector<16x1xi1> to vector<16x128xi1>
    %68 = arith.select %67, %64, %65 : vector<16x128xi1>, vector<16x128xf32>
    %c1_i32_20 = arith.constant 1 : i32
    %69 = vector.broadcast %c1_i32_20 : i32 to vector<16x1xi32>
    %70 = arith.andi %17, %69 : vector<16x1xi32>
    %c0_i32_21 = arith.constant 0 : i32
    %71 = vector.broadcast %c0_i32_21 : i32 to vector<16x1xi32>
    %72 = arith.cmpi eq, %70, %71 : vector<16x1xi32>
    %c4_i32_22 = arith.constant 4 : i32
    %73 = vector.broadcast %c4_i32_22 : i32 to vector<16x1xi32>
    %74 = arith.andi %17, %73 : vector<16x1xi32>
    %c0_i32_23 = arith.constant 0 : i32
    %75 = vector.broadcast %c0_i32_23 : i32 to vector<16x1xi32>
    %76 = arith.cmpi ne, %74, %75 : vector<16x1xi32>
    %77 = arith.xori %72, %76 : vector<16x1xi1>
    %cst_24 = arith.constant dense<true> : vector<16x1xi1>
    %78 = arith.xori %77, %cst_24 : vector<16x1xi1>
    %c15_i32_25 = arith.constant 15 : i32
    %79 = tpu.dynamic_rotate %68 by %c15_i32_25 dim 0 : vector<16x128xf32>, i32 -> vector<16x128xf32>
    %c1_i32_26 = arith.constant 1 : i32
    %80 = tpu.dynamic_rotate %68 by %c1_i32_26 dim 0 : vector<16x128xf32>, i32 -> vector<16x128xf32>
    %81 = vector.broadcast %22 : vector<1x1xi1> to vector<16x1xi1>
    %82 = vector.broadcast %81 : vector<16x1xi1> to vector<16x1xi1>
    %83 = arith.xori %72, %82 : vector<16x1xi1>
    %84 = vector.shape_cast %83 : vector<16x1xi1> to vector<16x1xi1>
    %85 = vector.broadcast %84 : vector<16x1xi1> to vector<16x128xi1>
    %86 = arith.select %85, %79, %80 : vector<16x128xi1>, vector<16x128xf32>
    %87 = arith.minimumf %68, %86 : vector<16x128xf32>
    %88 = arith.maximumf %68, %86 : vector<16x128xf32>
    %89 = vector.shape_cast %78 : vector<16x1xi1> to vector<16x1xi1>
    %90 = vector.broadcast %89 : vector<16x1xi1> to vector<16x128xi1>
    %91 = arith.select %90, %87, %88 : vector<16x128xi1>, vector<16x128xf32>
    %c4_i32_27 = arith.constant 4 : i32
    %92 = vector.broadcast %c4_i32_27 : i32 to vector<16x1xi32>
    %93 = arith.andi %17, %92 : vector<16x1xi32>
    %c0_i32_28 = arith.constant 0 : i32
    %94 = vector.broadcast %c0_i32_28 : i32 to vector<16x1xi32>
    %95 = arith.cmpi eq, %93, %94 : vector<16x1xi32>
    %c8_i32 = arith.constant 8 : i32
    %96 = vector.broadcast %c8_i32 : i32 to vector<16x1xi32>
    %97 = arith.andi %17, %96 : vector<16x1xi32>
    %c0_i32_29 = arith.constant 0 : i32
    %98 = vector.broadcast %c0_i32_29 : i32 to vector<16x1xi32>
    %99 = arith.cmpi ne, %97, %98 : vector<16x1xi32>
    %100 = arith.xori %95, %99 : vector<16x1xi1>
    %cst_30 = arith.constant dense<true> : vector<16x1xi1>
    %101 = arith.xori %100, %cst_30 : vector<16x1xi1>
    %c12_i32 = arith.constant 12 : i32
    %102 = tpu.dynamic_rotate %91 by %c12_i32 dim 0 : vector<16x128xf32>, i32 -> vector<16x128xf32>
    %c4_i32_31 = arith.constant 4 : i32
    %103 = tpu.dynamic_rotate %91 by %c4_i32_31 dim 0 : vector<16x128xf32>, i32 -> vector<16x128xf32>
    %104 = vector.broadcast %22 : vector<1x1xi1> to vector<16x1xi1>
    %105 = vector.broadcast %104 : vector<16x1xi1> to vector<16x1xi1>
    %106 = arith.xori %95, %105 : vector<16x1xi1>
    %107 = vector.shape_cast %106 : vector<16x1xi1> to vector<16x1xi1>
    %108 = vector.broadcast %107 : vector<16x1xi1> to vector<16x128xi1>
    %109 = arith.select %108, %102, %103 : vector<16x128xi1>, vector<16x128xf32>
    %110 = arith.minimumf %91, %109 : vector<16x128xf32>
    %111 = arith.maximumf %91, %109 : vector<16x128xf32>
    %112 = vector.shape_cast %101 : vector<16x1xi1> to vector<16x1xi1>
    %113 = vector.broadcast %112 : vector<16x1xi1> to vector<16x128xi1>
    %114 = arith.select %113, %110, %111 : vector<16x128xi1>, vector<16x128xf32>
    %c2_i32_32 = arith.constant 2 : i32
    %115 = vector.broadcast %c2_i32_32 : i32 to vector<16x1xi32>
    %116 = arith.andi %17, %115 : vector<16x1xi32>
    %c0_i32_33 = arith.constant 0 : i32
    %117 = vector.broadcast %c0_i32_33 : i32 to vector<16x1xi32>
    %118 = arith.cmpi eq, %116, %117 : vector<16x1xi32>
    %c8_i32_34 = arith.constant 8 : i32
    %119 = vector.broadcast %c8_i32_34 : i32 to vector<16x1xi32>
    %120 = arith.andi %17, %119 : vector<16x1xi32>
    %c0_i32_35 = arith.constant 0 : i32
    %121 = vector.broadcast %c0_i32_35 : i32 to vector<16x1xi32>
    %122 = arith.cmpi ne, %120, %121 : vector<16x1xi32>
    %123 = arith.xori %118, %122 : vector<16x1xi1>
    %cst_36 = arith.constant dense<true> : vector<16x1xi1>
    %124 = arith.xori %123, %cst_36 : vector<16x1xi1>
    %c14_i32_37 = arith.constant 14 : i32
    %125 = tpu.dynamic_rotate %114 by %c14_i32_37 dim 0 : vector<16x128xf32>, i32 -> vector<16x128xf32>
    %c2_i32_38 = arith.constant 2 : i32
    %126 = tpu.dynamic_rotate %114 by %c2_i32_38 dim 0 : vector<16x128xf32>, i32 -> vector<16x128xf32>
    %127 = vector.broadcast %22 : vector<1x1xi1> to vector<16x1xi1>
    %128 = vector.broadcast %127 : vector<16x1xi1> to vector<16x1xi1>
    %129 = arith.xori %118, %128 : vector<16x1xi1>
    %130 = vector.shape_cast %129 : vector<16x1xi1> to vector<16x1xi1>
    %131 = vector.broadcast %130 : vector<16x1xi1> to vector<16x128xi1>
    %132 = arith.select %131, %125, %126 : vector<16x128xi1>, vector<16x128xf32>
    %133 = arith.minimumf %114, %132 : vector<16x128xf32>
    %134 = arith.maximumf %114, %132 : vector<16x128xf32>
    %135 = vector.shape_cast %124 : vector<16x1xi1> to vector<16x1xi1>
    %136 = vector.broadcast %135 : vector<16x1xi1> to vector<16x128xi1>
    %137 = arith.select %136, %133, %134 : vector<16x128xi1>, vector<16x128xf32>
    %c1_i32_39 = arith.constant 1 : i32
    %138 = vector.broadcast %c1_i32_39 : i32 to vector<16x1xi32>
    %139 = arith.andi %17, %138 : vector<16x1xi32>
    %c0_i32_40 = arith.constant 0 : i32
    %140 = vector.broadcast %c0_i32_40 : i32 to vector<16x1xi32>
    %141 = arith.cmpi eq, %139, %140 : vector<16x1xi32>
    %c8_i32_41 = arith.constant 8 : i32
    %142 = vector.broadcast %c8_i32_41 : i32 to vector<16x1xi32>
    %143 = arith.andi %17, %142 : vector<16x1xi32>
    %c0_i32_42 = arith.constant 0 : i32
    %144 = vector.broadcast %c0_i32_42 : i32 to vector<16x1xi32>
    %145 = arith.cmpi ne, %143, %144 : vector<16x1xi32>
    %146 = arith.xori %141, %145 : vector<16x1xi1>
    %cst_43 = arith.constant dense<true> : vector<16x1xi1>
    %147 = arith.xori %146, %cst_43 : vector<16x1xi1>
    %c15_i32_44 = arith.constant 15 : i32
    %148 = tpu.dynamic_rotate %137 by %c15_i32_44 dim 0 : vector<16x128xf32>, i32 -> vector<16x128xf32>
    %c1_i32_45 = arith.constant 1 : i32
    %149 = tpu.dynamic_rotate %137 by %c1_i32_45 dim 0 : vector<16x128xf32>, i32 -> vector<16x128xf32>
    %150 = vector.broadcast %22 : vector<1x1xi1> to vector<16x1xi1>
    %151 = vector.broadcast %150 : vector<16x1xi1> to vector<16x1xi1>
    %152 = arith.xori %141, %151 : vector<16x1xi1>
    %153 = vector.shape_cast %152 : vector<16x1xi1> to vector<16x1xi1>
    %154 = vector.broadcast %153 : vector<16x1xi1> to vector<16x128xi1>
    %155 = arith.select %154, %148, %149 : vector<16x128xi1>, vector<16x128xf32>
    %156 = arith.minimumf %137, %155 : vector<16x128xf32>
    %157 = arith.maximumf %137, %155 : vector<16x128xf32>
    %158 = vector.shape_cast %147 : vector<16x1xi1> to vector<16x1xi1>
    %159 = vector.broadcast %158 : vector<16x1xi1> to vector<16x128xi1>
    %160 = arith.select %159, %156, %157 : vector<16x128xi1>, vector<16x128xf32>
    %161 = vector.shape_cast %160 : vector<16x128xf32> to vector<2x8x128xf32>
    %c0_46 = arith.constant 0 : index
    %c0_47 = arith.constant 0 : index
    %c0_48 = arith.constant 0 : index
    %162 = vector.load %arg4[%c0_46, %c0_47, %c0_48] : memref<2x8x1xf32, #tpu.memory_space<vmem>>, vector<2x8x1xf32>
    %163 = vector.broadcast %162 : vector<2x8x1xf32> to vector<2x8x128xf32>
    %164 = arith.mulf %161, %163 : vector<2x8x128xf32>
    %cst_49 = arith.constant dense<0.000000e+00> : vector<2x128xf32>
    %165 = vector.multi_reduction <add>, %164, %cst_49 [1] : vector<2x8x128xf32> to vector<2x128xf32>
    %166 = arith.mulf %165, %165 : vector<2x128xf32>
    %cst_50 = arith.constant dense<0.000000e+00> : vector<2xf32>
    %167 = vector.multi_reduction <add>, %166, %cst_50 [1] : vector<2x128xf32> to vector<2xf32>
    %168 = vector.shape_cast %167 : vector<2xf32> to vector<2x1xf32>
    %169 = math.sqrt %168 : vector<2x1xf32>
    %cst_51 = arith.constant 9.99999993E-9 : f32
    %170 = vector.broadcast %cst_51 : f32 to vector<2x1xf32>
    %171 = arith.addf %169, %170 : vector<2x1xf32>
    %172 = vector.broadcast %171 : vector<2x1xf32> to vector<2x128xf32>
    %173 = arith.divf %165, %172 : vector<2x128xf32>
    %c0_52 = arith.constant 0 : index
    %c0_53 = arith.constant 0 : index
    %174 = vector.load %arg6[%c0_52, %c0_53] : memref<2x128xf32, #tpu.memory_space<vmem>>, vector<2x128xf32>
    tpu.vector_store %arg6[%c0_52, %c0_53], %173 {strides = array<i32>} : memref<2x128xf32, #tpu.memory_space<vmem>>, vector<2x128xf32>,
    return
  }
  func.func @transform_0(%arg0: i32) -> (i32, i32, i32) {
    %c0_i32 = arith.constant 0 : i32
    %c0_i32_0 = arith.constant 0 : i32
    %c0_i32_1 = arith.constant 0 : i32
    return %arg0, %c0_i32, %c0_i32_0 : i32, i32, i32
  }
  func.func @transform_1(%arg0: i32) -> (i32, i32) {
    %c0_i32 = arith.constant 0 : i32
    %c0_i32_0 = arith.constant 0 : i32
    %c0_i32_1 = arith.constant 0 : i32
    return %c0_i32, %c0_i32_0 : i32, i32
  }
  func.func @transform_2(%arg0: i32) -> (i32, i32) {
    %c0_i32 = arith.constant 0 : i32
    %c0_i32_0 = arith.constant 0 : i32
    %c0_i32_1 = arith.constant 0 : i32
    return %c0_i32, %c0_i32_0 : i32, i32
  }
  func.func @transform_3(%arg0: i32) -> (i32, i32, i32) {
    %c0_i32 = arith.constant 0 : i32
    %c0_i32_0 = arith.constant 0 : i32
    %c0_i32_1 = arith.constant 0 : i32
    return %arg0, %c0_i32, %c0_i32_0 : i32, i32, i32
  }
  func.func @transform_4(%arg0: i32) -> (i32, i32) {
    %c0_i32 = arith.constant 0 : i32
    %c0_i32_0 = arith.constant 0 : i32
    return %arg0, %c0_i32 : i32, i32
  }
  func.func @transform_5(%arg0: i32) -> (i32, i32) {
    %c0_i32 = arith.constant 0 : i32
    %c0_i32_0 = arith.constant 0 : i32
    return %arg0, %c0_i32 : i32, i32
  }
}

</mosaic_0001>

<llo_original>
// kernel: custom-call.1
$region0: #{custom-call.1}
  %s0 = inlined_call_operand.vmem [shape: f32[2,32], index: 0, kind: output, shape index: {}]

// kernel: encoder_text_forward.1
$region0: #{encoder_text_forward.1}
  #allocation0 [shape = 'u32[]', space=smem, size = 0x4, offset = 0x4, fixed_abs, tag = 'smem constant byte address 0x4 - core index']
  #allocation1 [shape = 'u32[144,128]{1,0:T(1,128)}', space=vmem, size = 0x12000, scoped, tag = 'internal scratch']
  %s0 = inlined_call_operand.vmem [shape: f32[2,8,768], index: 0, kind: input, shape index: {}]
  %s1 = inlined_call_operand.vmem [shape: bf16[768,128], index: 1, kind: input, shape index: {}]
  %s2 = inlined_call_operand.vmem [shape: f32[1,128], index: 2, kind: input, shape index: {}]
  %s3 = inlined_call_operand.vmem [shape: f32[2,8,1], index: 3, kind: input, shape index: {}]
  %s4 = inlined_call_operand.vmem [shape: f32[16,1], index: 4, kind: input, shape index: {}]
  %s5 = inlined_call_operand.hbm [shape: f32[2,128], index: 5, kind: output, shape index: {}]
  %s6 = sld [smem:[#allocation0]]
  $region30: #{encoder_text_forward.1} parent=0
    _
  %s8 = ssub.s32 1, %s6
  %s9 = scalar_select 0, %s8, %s6
  $region1: #{encoder_text_forward.1} parent=0
    #allocation2 [shape = 'u8[1024]{0}', space=vmem, size = 0x400, scoped, tag = 'output window, operand 0, single buffered']
    #allocation3 [shape = 's32[1]{0}', space=sflag, size = 0x4, scoped, tag = 'scoped memory for encoder_text_forward.1']
    %10 = vsyncpa [#allocation3], 0
    // Predicated region
    $region2: #{encoder_text_forward.1} parent=1 // pred_check
      _
    $region3: #{encoder_text_forward.1} parent=1 // pred_check_branch
      %12 = sbr.rel (0) target = $region5
    $region4: #{encoder_text_forward.1} parent=1 // pred_region
      _
    $region5: #{encoder_text_forward.1} parent=1 // pred_fallthru
      _
    // Predicated region
    $region6: #{encoder_text_forward.1} parent=1 // pred_check
      _
    $region7: #{encoder_text_forward.1} parent=1 // pred_check_branch
      %14 = sbr.rel (0) target = $region9
    $region8: #{encoder_text_forward.1} parent=1 // pred_region
      _
    $region9: #{encoder_text_forward.1} parent=1 // pred_fallthru
      _
    // Predicated region
    $region10: #{encoder_text_forward.1} parent=1 // pred_check
      _
    $region11: #{encoder_text_forward.1} parent=1 // pred_check_branch
      %16 = sbr.rel (0) target = $region13
    $region12: #{encoder_text_forward.1} parent=1 // pred_region
      _
    $region13: #{encoder_text_forward.1} parent=1 // pred_fallthru
      _
    // Predicated region
    $region14: #{encoder_text_forward.1} parent=1 // pred_check
      _
    $region15: #{encoder_text_forward.1} parent=1 // pred_check_branch
      %18 = sbr.rel (0) target = $region17
    $region16: #{encoder_text_forward.1} parent=1 // pred_region
      _
    $region17: #{encoder_text_forward.1} parent=1 // pred_fallthru
      _
    // Predicated region
    $region18: #{encoder_text_forward.1} parent=1 // pred_check
      _
    $region19: #{encoder_text_forward.1} parent=1 // pred_check_branch
      %20 = sbr.rel (0) target = $region21
    $region20: #{encoder_text_forward.1} parent=1 // pred_region
      _
    $region21: #{encoder_text_forward.1} parent=1 // pred_fallthru
      _
    %v22 = vld [vmem:[%s0] sm:$0xff]
    %v23 = vld [vmem:[%s0 + $0x8] sm:$0xff]
    %v24 = vld [vmem:[%s0 + $0x10] sm:$0xff]
    %v25 = vld [vmem:[%s0 + $0x18] sm:$0xff]
    %v26 = vld [vmem:[%s0 + $0x20] sm:$0xff]
    %v27 = vld [vmem:[%s0 + $0x28] sm:$0xff]
    %v28 = vld [vmem:[%s0 + $0x30] sm:$0xff]
    %v29 = vld [vmem:[%s0 + $0x38] sm:$0xff]
    %v30 = vld [vmem:[%s0 + $0x40] sm:$0xff]
    %v31 = vld [vmem:[%s0 + $0x48] sm:$0xff]
    %v32 = vld [vmem:[%s0 + $0x50] sm:$0xff]
    %v33 = vld [vmem:[%s0 + $0x58] sm:$0xff]
    %v34 = vpack.c.bf16 %v28, %v22
    %v35 = vpack.c.bf16 %v29, %v23
    %v36 = vpack.c.bf16 %v30, %v24
    %v37 = vpack.c.bf16 %v31, %v25
    %v38 = vpack.c.bf16 %v32, %v26
    %v39 = vpack.c.bf16 %v33, %v27
    %v40 = vld [vmem:[%s1] sm:$0xf]
    %v41 = vld [vmem:[%s1 + $0x4] sm:$0xf]
    %v42 = vld [vmem:[%s1 + $0x8] sm:$0xf]
    %v43 = vld [vmem:[%s1 + $0xc] sm:$0xf]
    %v44 = vld [vmem:[%s1 + $0x10] sm:$0xf]
    %v45 = vld [vmem:[%s1 + $0x14] sm:$0xf]
    %v46 = vld [vmem:[%s1 + $0x18] sm:$0xf]
    %v47 = vld [vmem:[%s1 + $0x1c] sm:$0xf]
    %v48 = vld [vmem:[%s1 + $0x20] sm:$0xf]
    %v49 = vld [vmem:[%s1 + $0x24] sm:$0xf]
    %v50 = vld [vmem:[%s1 + $0x28] sm:$0xf]
    %v51 = vld [vmem:[%s1 + $0x2c] sm:$0xf]
    %v52 = vld [vmem:[%s1 + $0x30] sm:$0xf]
    %v53 = vld [vmem:[%s1 + $0x34] sm:$0xf]
    %v54 = vld [vmem:[%s1 + $0x38] sm:$0xf]
    %v55 = vld [vmem:[%s1 + $0x3c] sm:$0xf]
    %v56 = vld [vmem:[%s1 + $0x40] sm:$0xf]
    %v57 = vld [vmem:[%s1 + $0x44] sm:$0xf]
    %v58 = vld [vmem:[%s1 + $0x48] sm:$0xf]
    %v59 = vld [vmem:[%s1 + $0x4c] sm:$0xf]
    %v60 = vld [vmem:[%s1 + $0x50] sm:$0xf]
    %v61 = vld [vmem:[%s1 + $0x54] sm:$0xf]
    %v62 = vld [vmem:[%s1 + $0x58] sm:$0xf]
    %v63 = vld [vmem:[%s1 + $0x5c] sm:$0xf]
    %v64 = vld [vmem:[%s1 + $0x60] sm:$0xf]
    %v65 = vld [vmem:[%s1 + $0x64] sm:$0xf]
    %v66 = vld [vmem:[%s1 + $0x68] sm:$0xf]
    %v67 = vld [vmem:[%s1 + $0x6c] sm:$0xf]
    %v68 = vld [vmem:[%s1 + $0x70] sm:$0xf]
    %v69 = vld [vmem:[%s1 + $0x74] sm:$0xf]
    %v70 = vld [vmem:[%s1 + $0x78] sm:$0xf]
    %v71 = vld [vmem:[%s1 + $0x7c] sm:$0xf]
    %v72 = vld [vmem:[%s1 + $0x80] sm:$0xf]
    %v73 = vld [vmem:[%s1 + $0x84] sm:$0xf]
    %v74 = vld [vmem:[%s1 + $0x88] sm:$0xf]
    %v75 = vld [vmem:[%s1 + $0x8c] sm:$0xf]
    %v76 = vld [vmem:[%s1 + $0x90] sm:$0xf]
    %v77 = vld [vmem:[%s1 + $0x94] sm:$0xf]
    %v78 = vld [vmem:[%s1 + $0x98] sm:$0xf]
    %v79 = vld [vmem:[%s1 + $0x9c] sm:$0xf]
    %v80 = vld [vmem:[%s1 + $0xa0] sm:$0xf]
    %v81 = vld [vmem:[%s1 + $0xa4] sm:$0xf]
    %v82 = vld [vmem:[%s1 + $0xa8] sm:$0xf]
    %v83 = vld [vmem:[%s1 + $0xac] sm:$0xf]
    %v84 = vld [vmem:[%s1 + $0xb0] sm:$0xf]
    %v85 = vld [vmem:[%s1 + $0xb4] sm:$0xf]
    %v86 = vld [vmem:[%s1 + $0xb8] sm:$0xf]
    %v87 = vld [vmem:[%s1 + $0xbc] sm:$0xf]
    %v88 = vld [vmem:[%s1 + $0xc0] sm:$0xf]
    %v89 = vld [vmem:[%s1 + $0xc4] sm:$0xf]
    %v90 = vld [vmem:[%s1 + $0xc8] sm:$0xf]
    %v91 = vld [vmem:[%s1 + $0xcc] sm:$0xf]
    %v92 = vld [vmem:[%s1 + $0xd0] sm:$0xf]
    %v93 = vld [vmem:[%s1 + $0xd4] sm:$0xf]
    %v94 = vld [vmem:[%s1 + $0xd8] sm:$0xf]
    %v95 = vld [vmem:[%s1 + $0xdc] sm:$0xf]
    %v96 = vld [vmem:[%s1 + $0xe0] sm:$0xf]
    %v97 = vld [vmem:[%s1 + $0xe4] sm:$0xf]
    %v98 = vld [vmem:[%s1 + $0xe8] sm:$0xf]
    %v99 = vld [vmem:[%s1 + $0xec] sm:$0xf]
    %v100 = vld [vmem:[%s1 + $0xf0] sm:$0xf]
    %v101 = vld [vmem:[%s1 + $0xf4] sm:$0xf]
    %v102 = vld [vmem:[%s1 + $0xf8] sm:$0xf]
    %v103 = vld [vmem:[%s1 + $0xfc] sm:$0xf]
    %v104 = vld [vmem:[%s1 + $0x100] sm:$0xf]
    %v105 = vld [vmem:[%s1 + $0x104] sm:$0xf]
    %v106 = vld [vmem:[%s1 + $0x108] sm:$0xf]
    %v107 = vld [vmem:[%s1 + $0x10c] sm:$0xf]
    %v108 = vld [vmem:[%s1 + $0x110] sm:$0xf]
    %v109 = vld [vmem:[%s1 + $0x114] sm:$0xf]
    %v110 = vld [vmem:[%s1 + $0x118] sm:$0xf]
    %v111 = vld [vmem:[%s1 + $0x11c] sm:$0xf]
    %v112 = vld [vmem:[%s1 + $0x120] sm:$0xf]
    %v113 = vld [vmem:[%s1 + $0x124] sm:$0xf]
    %v114 = vld [vmem:[%s1 + $0x128] sm:$0xf]
    %v115 = vld [vmem:[%s1 + $0x12c] sm:$0xf]
    %v116 = vld [vmem:[%s1 + $0x130] sm:$0xf]
    %v117 = vld [vmem:[%s1 + $0x134] sm:$0xf]
    %v118 = vld [vmem:[%s1 + $0x138] sm:$0xf]
    %v119 = vld [vmem:[%s1 + $0x13c] sm:$0xf]
    %v120 = vld [vmem:[%s1 + $0x140] sm:$0xf]
    %v121 = vld [vmem:[%s1 + $0x144] sm:$0xf]
    %v122 = vld [vmem:[%s1 + $0x148] sm:$0xf]
    %v123 = vld [vmem:[%s1 + $0x14c] sm:$0xf]
    %v124 = vld [vmem:[%s1 + $0x150] sm:$0xf]
    %v125 = vld [vmem:[%s1 + $0x154] sm:$0xf]
    %v126 = vld [vmem:[%s1 + $0x158] sm:$0xf]
    %v127 = vld [vmem:[%s1 + $0x15c] sm:$0xf]
    %v128 = vld [vmem:[%s1 + $0x160] sm:$0xf]
    %v129 = vld [vmem:[%s1 + $0x164] sm:$0xf]
    %v130 = vld [vmem:[%s1 + $0x168] sm:$0xf]
    %v131 = vld [vmem:[%s1 + $0x16c] sm:$0xf]
    %v132 = vld [vmem:[%s1 + $0x170] sm:$0xf]
    %v133 = vld [vmem:[%s1 + $0x174] sm:$0xf]
    %v134 = vld [vmem:[%s1 + $0x178] sm:$0xf]
    %v135 = vld [vmem:[%s1 + $0x17c] sm:$0xf]
    %v136 = vld [vmem:[%s2] sm:$0x1]
    %v138 = vlaneseq
    %v139 = vshrl.u32 %v138, 7
    %v140 = vsub.s32 0, %v139
    %v141 = vrot.slane %v136, %v140
    %v239 = vunpack.c.l.b16 %v40
    %v240 = vunpack.c.l.b16 %v41
    %v241 = vunpack.c.l.b16 %v42
    %v242 = vunpack.c.l.b16 %v43
    %v243 = vunpack.c.l.b16 %v44
    %v244 = vunpack.c.l.b16 %v45
    %v245 = vunpack.c.l.b16 %v46
    %v246 = vunpack.c.l.b16 %v47
    %v247 = vunpack.c.l.b16 %v48
    %v248 = vunpack.c.l.b16 %v49
    %v249 = vunpack.c.l.b16 %v50
    %v250 = vunpack.c.l.b16 %v51
    %v251 = vunpack.c.l.b16 %v52
    %v252 = vunpack.c.l.b16 %v53
    %v253 = vunpack.c.l.b16 %v54
    %v254 = vunpack.c.l.b16 %v55
    %v255 = vunpack.c.l.b16 %v56
    %v256 = vunpack.c.l.b16 %v57
    %v257 = vunpack.c.l.b16 %v58
    %v258 = vunpack.c.l.b16 %v59
    %v259 = vunpack.c.l.b16 %v60
    %v260 = vunpack.c.l.b16 %v61
    %v261 = vunpack.c.l.b16 %v62
    %v262 = vunpack.c.l.b16 %v63
    %v263 = vunpack.c.l.b16 %v64
    %v264 = vunpack.c.l.b16 %v65
    %v265 = vunpack.c.l.b16 %v66
    %v266 = vunpack.c.l.b16 %v67
    %v267 = vunpack.c.l.b16 %v68
    %v268 = vunpack.c.l.b16 %v69
    %v269 = vunpack.c.l.b16 %v70
    %v270 = vunpack.c.l.b16 %v71
    %v271 = vunpack.c.l.b16 %v72
    %v272 = vunpack.c.l.b16 %v73
    %v273 = vunpack.c.l.b16 %v74
    %v274 = vunpack.c.l.b16 %v75
    %v275 = vunpack.c.l.b16 %v76
    %v276 = vunpack.c.l.b16 %v77
    %v277 = vunpack.c.l.b16 %v78
    %v278 = vunpack.c.l.b16 %v79
    %v279 = vunpack.c.l.b16 %v80
    %v280 = vunpack.c.l.b16 %v81
    %v281 = vunpack.c.l.b16 %v82
    %v282 = vunpack.c.l.b16 %v83
    %v283 = vunpack.c.l.b16 %v84
    %v284 = vunpack.c.l.b16 %v85
    %v285 = vunpack.c.l.b16 %v86
    %v286 = vunpack.c.l.b16 %v87
    %v287 = vunpack.c.l.b16 %v88
    %v288 = vunpack.c.l.b16 %v89
    %v289 = vunpack.c.l.b16 %v90
    %v290 = vunpack.c.l.b16 %v91
    %v291 = vunpack.c.l.b16 %v92
    %v292 = vunpack.c.l.b16 %v93
    %v293 = vunpack.c.l.b16 %v94
    %v294 = vunpack.c.l.b16 %v95
    %v295 = vunpack.c.l.b16 %v96
    %v296 = vunpack.c.l.b16 %v97
    %v297 = vunpack.c.l.b16 %v98
    %v298 = vunpack.c.l.b16 %v99
    %v299 = vunpack.c.l.b16 %v100
    %v300 = vunpack.c.l.b16 %v101
    %v301 = vunpack.c.l.b16 %v102
    %v302 = vunpack.c.l.b16 %v103
    %v303 = vunpack.c.l.b16 %v104
    %v304 = vunpack.c.l.b16 %v105
    %v305 = vunpack.c.l.b16 %v106
    %v306 = vunpack.c.l.b16 %v107
    %v307 = vunpack.c.l.b16 %v108
    %v308 = vunpack.c.l.b16 %v109
    %v309 = vunpack.c.l.b16 %v110
    %v310 = vunpack.c.l.b16 %v111
    %v311 = vunpack.c.l.b16 %v112
    %v312 = vunpack.c.l.b16 %v113
    %v313 = vunpack.c.l.b16 %v114
    %v314 = vunpack.c.l.b16 %v115
    %v315 = vunpack.c.l.b16 %v116
    %v316 = vunpack.c.l.b16 %v117
    %v317 = vunpack.c.l.b16 %v118
    %v318 = vunpack.c.l.b16 %v119
    %v319 = vunpack.c.l.b16 %v120
    %v320 = vunpack.c.l.b16 %v121
    %v321 = vunpack.c.l.b16 %v122
    %v322 = vunpack.c.l.b16 %v123
    %v323 = vunpack.c.l.b16 %v124
    %v324 = vunpack.c.l.b16 %v125
    %v325 = vunpack.c.l.b16 %v126
    %v326 = vunpack.c.l.b16 %v127
    %v327 = vunpack.c.l.b16 %v128
    %v328 = vunpack.c.l.b16 %v129
    %v329 = vunpack.c.l.b16 %v130
    %v330 = vunpack.c.l.b16 %v131
    %v331 = vunpack.c.l.b16 %v132
    %v332 = vunpack.c.l.b16 %v133
    %v333 = vunpack.c.l.b16 %v134
    %v334 = vunpack.c.l.b16 %v135
    %v335 = vpack.c.b16 %v240, %v239
    %v336 = vpack.c.b16 %v242, %v241
    %v337 = vpack.c.b16 %v244, %v243
    %v338 = vpack.c.b16 %v246, %v245
    %v339 = vpack.c.b16 %v248, %v247
    %v340 = vpack.c.b16 %v250, %v249
    %v341 = vpack.c.b16 %v252, %v251
    %v342 = vpack.c.b16 %v254, %v253
    %v343 = vpack.c.b16 %v256, %v255
    %v344 = vpack.c.b16 %v258, %v257
    %v345 = vpack.c.b16 %v260, %v259
    %v346 = vpack.c.b16 %v262, %v261
    %v347 = vpack.c.b16 %v264, %v263
    %v348 = vpack.c.b16 %v266, %v265
    %v349 = vpack.c.b16 %v268, %v267
    %v350 = vpack.c.b16 %v270, %v269
    %v351 = vpack.c.b16 %v272, %v271
    %v352 = vpack.c.b16 %v274, %v273
    %v353 = vpack.c.b16 %v276, %v275
    %v354 = vpack.c.b16 %v278, %v277
    %v355 = vpack.c.b16 %v280, %v279
    %v356 = vpack.c.b16 %v282, %v281
    %v357 = vpack.c.b16 %v284, %v283
    %v358 = vpack.c.b16 %v286, %v285
    %v359 = vpack.c.b16 %v288, %v287
    %v360 = vpack.c.b16 %v290, %v289
    %v361 = vpack.c.b16 %v292, %v291
    %v362 = vpack.c.b16 %v294, %v293
    %v363 = vpack.c.b16 %v296, %v295
    %v364 = vpack.c.b16 %v298, %v297
    %v365 = vpack.c.b16 %v300, %v299
    %v366 = vpack.c.b16 %v302, %v301
    %v367 = vpack.c.b16 %v304, %v303
    %v368 = vpack.c.b16 %v306, %v305
    %v369 = vpack.c.b16 %v308, %v307
    %v370 = vpack.c.b16 %v310, %v309
    %v371 = vpack.c.b16 %v312, %v311
    %v372 = vpack.c.b16 %v314, %v313
    %v373 = vpack.c.b16 %v316, %v315
    %v374 = vpack.c.b16 %v318, %v317
    %v375 = vpack.c.b16 %v320, %v319
    %v376 = vpack.c.b16 %v322, %v321
    %v377 = vpack.c.b16 %v324, %v323
    %v378 = vpack.c.b16 %v326, %v325
    %v379 = vpack.c.b16 %v328, %v327
    %v380 = vpack.c.b16 %v330, %v329
    %v381 = vpack.c.b16 %v332, %v331
    %v382 = vpack.c.b16 %v334, %v333
    %431 = vmatprep.subr.bf16.mxu0 0
    %432 = vmatpush1.bf16.msra.mxu0 %v335
    %433 = vmatprep.subr.bf16.mxu0 0
    %434 = vmatpush1.bf16.msra.mxu0 %v336
    %435 = vmatprep.subr.bf16.mxu0 0
    %436 = vmatpush1.bf16.msra.mxu0 %v337
    %437 = vmatprep.subr.bf16.mxu0 0
    %438 = vmatpush1.bf16.msra.mxu0 %v338
    %439 = vmatprep.subr.bf16.mxu0 0
    %440 = vmatpush1.bf16.msra.mxu0 %v339
    %441 = vmatprep.subr.bf16.mxu0 0
    %442 = vmatpush1.bf16.msra.mxu0 %v340
    %443 = vmatprep.subr.bf16.mxu0 0
    %444 = vmatpush1.bf16.msra.mxu0 %v341
    %445 = vmatprep.subr.bf16.mxu0 0
    %446 = vmatpush1.bf16.msra.mxu0 %v342
    %447 = vmatprep.subr.bf16.mxu0 0
    %448 = vmatpush1.bf16.msra.mxu0 %v343
    %449 = vmatprep.subr.bf16.mxu0 0
    %450 = vmatpush1.bf16.msra.mxu0 %v344
    %451 = vmatprep.subr.bf16.mxu0 0
    %452 = vmatpush1.bf16.msra.mxu0 %v345
    %453 = vmatprep.subr.bf16.mxu0 0
    %454 = vmatpush1.bf16.msra.mxu0 %v346
    %455 = vmatprep.subr.bf16.mxu0 0
    %456 = vmatpush1.bf16.msra.mxu0 %v347
    %457 = vmatprep.subr.bf16.mxu0 0
    %458 = vmatpush1.bf16.msra.mxu0 %v348
    %459 = vmatprep.subr.bf16.mxu0 0
    %460 = vmatpush1.bf16.msra.mxu0 %v349
    %461 = vmatprep.subr.bf16.mxu0 0
    %462 = vmatpush1.bf16.msra.mxu0 %v350
    %463 = vmatprep.mubr.bf16.mxu0 %v35
    %464 = vmatmul.mubr.bf16.gmra.mrb[0].mxu0 %v34
    %v465 = vpop.f32.mrb[0].mxu0
    %v466 = vadd.f32 %v141, %v465
    %v467 = vpop.f32.mrb[0].mxu0
    %v468 = vpop.f32.mrb[0].mxu0
    %v469 = vadd.f32 %v141, %v468
    %v470 = vpop.f32.mrb[0].mxu0
    %471 = vdwg.mxu0
    %472 = vmatprep.subr.bf16.mxu0 0
    %473 = vmatpush1.bf16.msra.mxu0 %v351
    %474 = vmatprep.subr.bf16.mxu0 0
    %475 = vmatpush1.bf16.msra.mxu0 %v352
    %476 = vmatprep.subr.bf16.mxu0 0
    %477 = vmatpush1.bf16.msra.mxu0 %v353
    %478 = vmatprep.subr.bf16.mxu0 0
    %479 = vmatpush1.bf16.msra.mxu0 %v354
    %480 = vmatprep.subr.bf16.mxu0 0
    %481 = vmatpush1.bf16.msra.mxu0 %v355
    %482 = vmatprep.subr.bf16.mxu0 0
    %483 = vmatpush1.bf16.msra.mxu0 %v356
    %484 = vmatprep.subr.bf16.mxu0 0
    %485 = vmatpush1.bf16.msra.mxu0 %v357
    %486 = vmatprep.subr.bf16.mxu0 0
    %487 = vmatpush1.bf16.msra.mxu0 %v358
    %488 = vmatprep.subr.bf16.mxu0 0
    %489 = vmatpush1.bf16.msra.mxu0 %v359
    %490 = vmatprep.subr.bf16.mxu0 0
    %491 = vmatpush1.bf16.msra.mxu0 %v360
    %492 = vmatprep.subr.bf16.mxu0 0
    %493 = vmatpush1.bf16.msra.mxu0 %v361
    %494 = vmatprep.subr.bf16.mxu0 0
    %495 = vmatpush1.bf16.msra.mxu0 %v362
    %496 = vmatprep.subr.bf16.mxu0 0
    %497 = vmatpush1.bf16.msra.mxu0 %v363
    %498 = vmatprep.subr.bf16.mxu0 0
    %499 = vmatpush1.bf16.msra.mxu0 %v364
    %500 = vmatprep.subr.bf16.mxu0 0
    %501 = vmatpush1.bf16.msra.mxu0 %v365
    %502 = vmatprep.subr.bf16.mxu0 0
    %503 = vmatpush1.bf16.msra.mxu0 %v366
    %504 = vmatprep.mubr.bf16.mxu0 %v37
    %505 = vmatmul.mubr.bf16.gmra.mrb[0].mxu0 %v36
    %v506 = vpop.f32.mrb[0].mxu0
    %v507 = vadd.f32 %v466, %v506
    %v508 = vpop.f32.mrb[0].mxu0
    %v509 = vpop.f32.mrb[0].mxu0
    %v510 = vadd.f32 %v469, %v509
    %v511 = vpop.f32.mrb[0].mxu0
    %512 = vdwg.mxu0
    %513 = vmatprep.subr.bf16.mxu0 0
    %514 = vmatpush1.bf16.msra.mxu0 %v367
    %515 = vmatprep.subr.bf16.mxu0 0
    %516 = vmatpush1.bf16.msra.mxu0 %v368
    %517 = vmatprep.subr.bf16.mxu0 0
    %518 = vmatpush1.bf16.msra.mxu0 %v369
    %519 = vmatprep.subr.bf16.mxu0 0
    %520 = vmatpush1.bf16.msra.mxu0 %v370
    %521 = vmatprep.subr.bf16.mxu0 0
    %522 = vmatpush1.bf16.msra.mxu0 %v371
    %523 = vmatprep.subr.bf16.mxu0 0
    %524 = vmatpush1.bf16.msra.mxu0 %v372
    %525 = vmatprep.subr.bf16.mxu0 0
    %526 = vmatpush1.bf16.msra.mxu0 %v373
    %527 = vmatprep.subr.bf16.mxu0 0
    %528 = vmatpush1.bf16.msra.mxu0 %v374
    %529 = vmatprep.subr.bf16.mxu0 0
    %530 = vmatpush1.bf16.msra.mxu0 %v375
    %531 = vmatprep.subr.bf16.mxu0 0
    %532 = vmatpush1.bf16.msra.mxu0 %v376
    %533 = vmatprep.subr.bf16.mxu0 0
    %534 = vmatpush1.bf16.msra.mxu0 %v377
    %535 = vmatprep.subr.bf16.mxu0 0
    %536 = vmatpush1.bf16.msra.mxu0 %v378
    %537 = vmatprep.subr.bf16.mxu0 0
    %538 = vmatpush1.bf16.msra.mxu0 %v379
    %539 = vmatprep.subr.bf16.mxu0 0
    %540 = vmatpush1.bf16.msra.mxu0 %v380
    %541 = vmatprep.subr.bf16.mxu0 0
    %542 = vmatpush1.bf16.msra.mxu0 %v381
    %543 = vmatprep.subr.bf16.mxu0 0
    %544 = vmatpush1.bf16.msra.mxu0 %v382
    %545 = vmatprep.mubr.bf16.mxu0 %v39
    %546 = vmatmul.mubr.bf16.gmra.mrb[0].mxu0 %v38
    %v547 = vpop.f32.mrb[0].mxu0
    %v548 = vadd.f32 %v507, %v547
    %v549 = vpop.f32.mrb[0].mxu0
    %v550 = vpop.f32.mrb[0].mxu0
    %v551 = vadd.f32 %v510, %v550
    %v552 = vpop.f32.mrb[0].mxu0
    %553 = vdwg.mxu0
    %v554 = vld [vmem:[%s4] sm:$0xff]
    %v555 = vld [vmem:[%s4 + $0x8] sm:$0xff]
    %vm556 = vcmp.gt.f32.partialorder %v554, 0.0
    %vm557 = vcmp.gt.f32.partialorder %v555, 0.0
    %v558 = vsel %vm556, 1, 0
    %v559 = vsel %vm557, 1, 0
    %560 = vset.pattern.permute.xlu0 0
    %561 = vperm.xlu0 %560, %v558
    %v562 = vpop.permute.xlu0 %561
    %563 = vset.pattern.permute.xlu0 0
    %564 = vperm.xlu0 %563, %v559
    %v565 = vpop.permute.xlu0 %564
    %vm566 = vcmp.eq.s32.totalorder %v562, 1
    %vm567 = vcmp.eq.s32.totalorder %v565, 1
    %v568 = vsel %vm566, %v548, -10000.0
    %v569 = vsel %vm567, %v551, -10000.0
    %v570 = vlaneseq
    %v571 = vshrl.u32 %v570, 7
    %v572 = vadd.s32 %v571, 8
    %v573 = vand.u32 %v571, 7
    %v574 = vand.u32 %v572, 7
    %v575 = vrot.slane %v571, 7
    %vm576 = vcmp.ne.s32.totalorder %v575, 7
    %v577 = vand.u32 %v573, 1
    %v578 = vand.u32 %v574, 1
    %vm579 = vcmp.eq.s32.totalorder %v577, 0
    %vm580 = vcmp.eq.s32.totalorder %v578, 0
    %v581 = vand.u32 %v573, 2
    %v582 = vand.u32 %v574, 2
    %vm583 = vcmp.ne.s32.totalorder %v581, 0
    %vm584 = vcmp.ne.s32.totalorder %v582, 0
    %vm585 = vmxor %vm579, %vm583
    %vm586 = vmxor %vm580, %vm584
    %vm587 = vmxor %vm585, 1
    %vm588 = vmxor %vm586, 1
    %v589 = vrot.slane %v568, 1
    %v590 = vrot.slane %v569, 1
    %vm591 = vcmp.lt.s32.totalorder %v571, 7
    %v592 = vsel %vm591, %v589, %v590
    %v593 = vsel %vm591, %v590, %v589
    %v594 = vrot.slane %v568, 7
    %v595 = vrot.slane %v569, 7
    %vm596 = vcmp.lt.s32.totalorder %v571, 1
    %v597 = vsel %vm596, %v594, %v595
    %v598 = vsel %vm596, %v595, %v594
    %v599 = vsel %vm576, 1, 0
    %v600 = vlaneseq
    %v601 = vshrl.u32 %v600, 7
    %v602 = vsub.s32 0, %v601
    %v603 = vrot.slane %v599, %v602
    %vm604 = vcmp.eq.s32.totalorder %v603, 1
    %vm605 = vmxor %vm579, %vm604
    %vm606 = vmxor %vm580, %vm604
    %v607 = vsel %vm605, 1, 0
    %v608 = vsel %vm606, 1, 0
    %609 = vset.pattern.permute.xlu0 0
    %610 = vperm.xlu0 %609, %v607
    %v611 = vpop.permute.xlu0 %610
    %612 = vset.pattern.permute.xlu0 0
    %613 = vperm.xlu0 %612, %v608
    %v614 = vpop.permute.xlu0 %613
    %vm615 = vcmp.eq.s32.totalorder %v611, 1
    %vm616 = vcmp.eq.s32.totalorder %v614, 1
    %v617 = vsel %vm615, %v592, %v598
    %v618 = vsel %vm616, %v593, %v597
    %v619 = vmin.f32 %v568, %v617
    %v620 = vmin.f32 %v569, %v618
    %v621 = vmax.f32 %v568, %v617
    %v622 = vmax.f32 %v569, %v618
    %v623 = vsel %vm587, 1, 0
    %v624 = vsel %vm588, 1, 0
    %vm625 = vcmp.eq.s32.totalorder %v623, 1
    %vm626 = vcmp.eq.s32.totalorder %v624, 1
    %v627 = vsel %vm625, %v619, %v621
    %v628 = vsel %vm626, %v620, %v622
    %vm629 = vcmp.eq.s32.totalorder %v581, 0
    %vm630 = vcmp.eq.s32.totalorder %v582, 0
    %v631 = vand.u32 %v573, 4
    %v632 = vand.u32 %v574, 4
    %vm633 = vcmp.ne.s32.totalorder %v631, 0
    %vm634 = vcmp.ne.s32.totalorder %v632, 0
    %vm635 = vmxor %vm629, %vm633
    %vm636 = vmxor %vm630, %vm634
    %vm637 = vmxor %vm635, 1
    %vm638 = vmxor %vm636, 1
    %v639 = vrot.slane %v627, 2
    %v640 = vrot.slane %v628, 2
    %vm641 = vcmp.lt.s32.totalorder %v571, 6
    %v642 = vsel %vm641, %v639, %v640
    %v643 = vsel %vm641, %v640, %v639
    %v644 = vrot.slane %v627, 6
    %v645 = vrot.slane %v628, 6
    %vm646 = vcmp.lt.s32.totalorder %v571, 2
    %v647 = vsel %vm646, %v644, %v645
    %v648 = vsel %vm646, %v645, %v644
    %vm649 = vmxor %vm629, %vm604
    %vm650 = vmxor %vm630, %vm604
    %v651 = vsel %vm649, 1, 0
    %v652 = vsel %vm650, 1, 0
    %653 = vset.pattern.permute.xlu0 0
    %654 = vperm.xlu0 %653, %v651
    %v655 = vpop.permute.xlu0 %654
    %656 = vset.pattern.permute.xlu0 0
    %657 = vperm.xlu0 %656, %v652
    %v658 = vpop.permute.xlu0 %657
    %vm659 = vcmp.eq.s32.totalorder %v655, 1
    %vm660 = vcmp.eq.s32.totalorder %v658, 1
    %v661 = vsel %vm659, %v642, %v648
    %v662 = vsel %vm660, %v643, %v647
    %v663 = vmin.f32 %v627, %v661
    %v664 = vmin.f32 %v628, %v662
    %v665 = vmax.f32 %v627, %v661
    %v666 = vmax.f32 %v628, %v662
    %v667 = vsel %vm637, 1, 0
    %v668 = vsel %vm638, 1, 0
    %vm669 = vcmp.eq.s32.totalorder %v667, 1
    %vm670 = vcmp.eq.s32.totalorder %v668, 1
    %v671 = vsel %vm669, %v663, %v665
    %v672 = vsel %vm670, %v664, %v666
    %vm673 = vmxor %vm579, %vm633
    %vm674 = vmxor %vm580, %vm634
    %vm675 = vmxor %vm673, 1
    %vm676 = vmxor %vm674, 1
    %v677 = vrot.slane %v671, 1
    %v678 = vrot.slane %v672, 1
    %v679 = vsel %vm591, %v677, %v678
    %v680 = vsel %vm591, %v678, %v677
    %v681 = vrot.slane %v671, 7
    %v682 = vrot.slane %v672, 7
    %v683 = vsel %vm596, %v681, %v682
    %v684 = vsel %vm596, %v682, %v681
    %v685 = vsel %vm615, %v679, %v684
    %v686 = vsel %vm616, %v680, %v683
    %v687 = vmin.f32 %v671, %v685
    %v688 = vmin.f32 %v672, %v686
    %v689 = vmax.f32 %v671, %v685
    %v690 = vmax.f32 %v672, %v686
    %v691 = vsel %vm675, 1, 0
    %v692 = vsel %vm676, 1, 0
    %vm693 = vcmp.eq.s32.totalorder %v691, 1
    %vm694 = vcmp.eq.s32.totalorder %v692, 1
    %v695 = vsel %vm693, %v687, %v689
    %v696 = vsel %vm694, %v688, %v690
    %vm697 = vcmp.eq.s32.totalorder %v631, 0
    %vm698 = vcmp.eq.s32.totalorder %v632, 0
    %v699 = vand.u32 %v573, 8
    %v700 = vand.u32 %v574, 8
    %vm701 = vcmp.ne.s32.totalorder %v699, 0
    %vm702 = vcmp.ne.s32.totalorder %v700, 0
    %vm703 = vmxor %vm697, %vm701
    %vm704 = vmxor %vm698, %vm702
    %vm705 = vmxor %vm703, 1
    %vm706 = vmxor %vm704, 1
    %v707 = vrot.slane %v695, 4
    %v708 = vrot.slane %v696, 4
    %vm709 = vcmp.lt.s32.totalorder %v571, 4
    %v710 = vsel %vm709, %v707, %v708
    %v711 = vsel %vm709, %v708, %v707
    %vm712 = vmxor %vm697, %vm604
    %vm713 = vmxor %vm698, %vm604
    %v714 = vsel %vm712, 1, 0
    %v715 = vsel %vm713, 1, 0
    %716 = vset.pattern.permute.xlu0 0
    %717 = vperm.xlu0 %716, %v714
    %v718 = vpop.permute.xlu0 %717
    %719 = vset.pattern.permute.xlu0 0
    %720 = vperm.xlu0 %719, %v715
    %v721 = vpop.permute.xlu0 %720
    %vm722 = vcmp.eq.s32.totalorder %v718, 1
    %vm723 = vcmp.eq.s32.totalorder %v721, 1
    %v724 = vsel %vm722, %v710, %v711
    %v725 = vsel %vm723, %v711, %v710
    %v726 = vmin.f32 %v695, %v724
    %v727 = vmin.f32 %v696, %v725
    %v728 = vmax.f32 %v695, %v724
    %v729 = vmax.f32 %v696, %v725
    %v730 = vsel %vm705, 1, 0
    %v731 = vsel %vm706, 1, 0
    %vm732 = vcmp.eq.s32.totalorder %v730, 1
    %vm733 = vcmp.eq.s32.totalorder %v731, 1
    %v734 = vsel %vm732, %v726, %v728
    %v735 = vsel %vm733, %v727, %v729
    %vm736 = vmxor %vm629, %vm701
    %vm737 = vmxor %vm630, %vm702
    %vm738 = vmxor %vm736, 1
    %vm739 = vmxor %vm737, 1
    %v740 = vrot.slane %v734, 2
    %v741 = vrot.slane %v735, 2
    %v742 = vsel %vm641, %v740, %v741
    %v743 = vsel %vm641, %v741, %v740
    %v744 = vrot.slane %v734, 6
    %v745 = vrot.slane %v735, 6
    %v746 = vsel %vm646, %v744, %v745
    %v747 = vsel %vm646, %v745, %v744
    %v748 = vsel %vm659, %v742, %v747
    %v749 = vsel %vm660, %v743, %v746
    %v750 = vmin.f32 %v734, %v748
    %v751 = vmin.f32 %v735, %v749
    %v752 = vmax.f32 %v734, %v748
    %v753 = vmax.f32 %v735, %v749
    %v754 = vsel %vm738, 1, 0
    %v755 = vsel %vm739, 1, 0
    %vm756 = vcmp.eq.s32.totalorder %v754, 1
    %vm757 = vcmp.eq.s32.totalorder %v755, 1
    %v758 = vsel %vm756, %v750, %v752
    %v759 = vsel %vm757, %v751, %v753
    %vm760 = vmxor %vm579, %vm701
    %vm761 = vmxor %vm580, %vm702
    %vm762 = vmxor %vm760, 1
    %vm763 = vmxor %vm761, 1
    %v764 = vrot.slane %v758, 1
    %v765 = vrot.slane %v759, 1
    %v766 = vsel %vm591, %v764, %v765
    %v767 = vsel %vm591, %v765, %v764
    %v768 = vrot.slane %v758, 7
    %v769 = vrot.slane %v759, 7
    %v770 = vsel %vm596, %v768, %v769
    %v771 = vsel %vm596, %v769, %v768
    %v772 = vsel %vm615, %v766, %v771
    %v773 = vsel %vm616, %v767, %v770
    %v774 = vmin.f32 %v758, %v772
    %v775 = vmin.f32 %v759, %v773
    %v776 = vmax.f32 %v758, %v772
    %v777 = vmax.f32 %v759, %v773
    %v778 = vsel %vm762, 1, 0
    %v779 = vsel %vm763, 1, 0
    %vm780 = vcmp.eq.s32.totalorder %v778, 1
    %vm781 = vcmp.eq.s32.totalorder %v779, 1
    %v782 = vsel %vm780, %v774, %v776
    %v783 = vsel %vm781, %v775, %v777
    %v784 = vld [vmem:[%s3] sm:$0xff]
    %v785 = vld [vmem:[%s3 + $0x8] sm:$0xff]
    %787 = vset.pattern.permute.xlu0 0
    %788 = vperm.xlu0 %787, %v784
    %v789 = vpop.permute.xlu0 %788
    %792 = vset.pattern.permute.xlu0 0
    %793 = vperm.xlu0 %792, %v785
    %v794 = vpop.permute.xlu0 %793
    %v796 = vmul.f32 %v782, %v789
    %v797 = vmul.f32 %v783, %v794
    %v798 = vrot.slane %v796, 4
    %v799 = vadd.f32 %v796, %v798
    %v800 = vrot.slane %v799, 2
    %v801 = vadd.f32 %v799, %v800
    %v802 = vrot.slane %v801, 1
    %v803 = vadd.f32 %v801, %v802
    %v804 = vrot.slane %v797, 4
    %v805 = vadd.f32 %v797, %v804
    %v806 = vrot.slane %v805, 2
    %v807 = vadd.f32 %v805, %v806
    %v808 = vrot.slane %v807, 1
    %v809 = vadd.f32 %v807, %v808
    %v810 = vmul.f32 %v803, %v803
    %v811 = vmul.f32 %v809, %v809
    %vm814 = vcmask 1041409
    %v815 = vsel %vm814, %v811, %v810
    %vm817 = vcmask 1041408
    %v818 = vsel %vm817, %v815, 0.0
    %819 = vadd.xlane.f32.xlu0 %v818
    %v820 = vpop.xlane.xlu0 %819
    %v821 = vrsqrt.pop %v820
    %v822 = vmul.f32 %v820, %v821
    %vm823 = vcmp.eq.f32.partialorder %v820, inf
    %v824 = vsel %vm823, %v820, %v822
    %vm825 = vcmp.eq.f32.partialorder %v820, 0.0
    %v826 = vand.u32 %v820, 2147483648
    %v827 = vsel %vm825, %v826, %v824
    %v828 = vadd.f32 %v827, 1e-08
    %v830 = vrot.slane %v828, 1
    %v833 = vrcp.pop %v828
    %v834 = vmul.f32 %v803, %v833
    %v835 = vrcp.pop %v830
    %v836 = vmul.f32 %v809, %v835
    %v839 = vrot.slane %v836, 7
    %v840 = vsel %vm814, %v839, %v834
    %842 = vst [vmem:[#allocation2] sm:$0x3] %v840
    // Predicated region
    $region22: #{encoder_text_forward.1} parent=1 // pred_check
      _
    $region23: #{encoder_text_forward.1} parent=1 // pred_check_branch
      %844 = sbr.rel (0) target = $region25
    $region24: #{encoder_text_forward.1} parent=1 // pred_region
      %s846 = ssub.s32 32, 32
      %847 = vsyncadd [#allocation3], %s846
      %s849 = sshll.u32 [#allocation2], 4
      %s850 = int_to_ptr.vmem [resolvable:$true] %s849
      %852 = dma.vmem_to_hbm [thread:$0]  %s850, 32, %s5, [#allocation3]
    $region25: #{encoder_text_forward.1} parent=1 // pred_fallthru
      _
    // Predicated region
    $region26: #{encoder_text_forward.1} parent=1 // pred_check
      _
    $region27: #{encoder_text_forward.1} parent=1 // pred_check_branch
      %854 = sbr.rel (0) target = $region29
    $region28: #{encoder_text_forward.1} parent=1 // pred_region
      %855 = dma.done [#allocation3], 32
    $region29: #{encoder_text_forward.1} parent=1 // pred_fallthru
      _
    %856 = vsyncpa [#allocation3], 1

</llo_original>
